<compile_context>
chip_gen: v5e
topology: v5e:2x2
jax: 0.10.0
libtpu: 0.0.40
codegen_flags: <defaults>
</compile_context>

<pallas_src>
import jax
import jax.numpy as jnp
from jax.experimental import pallas as pl
from jax.experimental.pallas import tpu as pltpu


def _round_up(v, m):
    return (v + m - 1) // m * m


def infog_enc_kernel(x_ref, w1_ref, b1_ref, wfc_t_ref, bfc_ref, out_ref):
    # x_ref:     (B*N, F)   bf16  flattened node features of B graphs
    # w1_ref:    (F, Hp)    bf16  encoder weight (only H lane-padded)
    # b1_ref:    (1, Hp)    f32   encoder bias
    # wfc_t_ref: (Hp, Zp)   bf16  fc weight, pre-transposed (z_g_dim, z_n_dim)
    # bfc_ref:   (1, Zp)    f32   fc bias
    # out_ref:   (B, Zp)    f32   fc(zg) for the B graphs (lane-dense block)
    B = out_ref.shape[0]
    BN = x_ref.shape[0]
    N = BN // B

    # Encoder node embeddings zn = relu(x @ W1 + b1): one bf16 MXU push for
    # all B graphs (M = B*N), f32 accumulation, f32 bias/relu on the VPU.
    zn = jnp.dot(x_ref[...], w1_ref[...], preferred_element_type=jnp.float32)
    zn = jnp.maximum(zn + b1_ref[...], 0.0)                   # (B*N, Hp) f32

    # Per-graph sum pooling: leading-dim reshape + sublane reduction (XLU).
    # N is a multiple of 8 so the f32 reshape is exactly tile-aligned.
    # TODO(synk): variable-size graphs need a per-graph node-count mask here;
    # zero-padded node rows would otherwise each contribute relu(b1) to zg.
    zg = jnp.sum(zn.reshape(B, N, -1), axis=1)                # (B, Hp) f32

    # fc for all B graphs as a single bf16 (B, Hp) @ (Hp, Zp) gemm with f32
    # accumulation (avoids the slow f32 MXU path); bias add stays f32.
    out = jnp.dot(zg.astype(jnp.bfloat16), wfc_t_ref[...],
                  preferred_element_type=jnp.float32)
    out_ref[...] = (out + bfc_ref[...]).astype(out_ref.dtype)


def prepare_infog_params(w1, b1, wfc, bfc):
    """Pad/cast the parameters once at setup time (hoisted out of the hot path).

    w1:  (F, z_g_dim)          encoder dense weight
    b1:  (z_g_dim,)            encoder dense bias
    wfc: (z_n_dim, z_g_dim)    fc weight in nn.Linear layout
    bfc: (z_n_dim,)            fc bias
    """
    F, H = w1.shape
    Z = wfc.shape[0]
    Hp = _round_up(H, 128)
    Zp = _round_up(Z, 128)

    w1p = jnp.zeros((F, Hp), jnp.bfloat16).at[:, :H].set(w1.astype(jnp.bfloat16))
    b1p = jnp.zeros((1, Hp), jnp.float32).at[0, :H].set(b1.astype(jnp.float32))
    wfct = jnp.zeros((Hp, Zp), jnp.bfloat16).at[:H, :Z].set(
        wfc.T.astype(jnp.bfloat16))                           # (H, Z) transposed
    bfcp = jnp.zeros((1, Zp), jnp.float32).at[0, :Z].set(bfc.astype(jnp.float32))
    return {"w1": w1p, "b1": b1p, "wfc_t": wfct, "bfc": bfcp, "H": H, "Z": Z}


def infog_enc_forward(x, params, *, graphs_per_step=16):
    """x: (G, N, F) node features; params from prepare_infog_params."""
    G, N, F = x.shape
    Hp = params["w1"].shape[1]
    Zp = params["wfc_t"].shape[1]
    Z = params["Z"]

    B = graphs_per_step
    Gp = _round_up(G, B)

    # Cheap graph-axis pad only (padded graphs are sliced off below); the
    # flatten to (Gp*N, F) is a free metadata reshape so the kernel sees a
    # tile-aligned (B*N, F) bf16 block with no in-kernel relayout.
    if Gp != G:
        x = jnp.concatenate(
            [x, jnp.zeros((Gp - G, N, F), x.dtype)], axis=0)
    xp = x.astype(jnp.bfloat16).reshape(Gp * N, F)

    out = pl.pallas_call(
        infog_enc_kernel,
        out_shape=jax.ShapeDtypeStruct((Gp, Zp), jnp.float32),
        grid_spec=pltpu.PrefetchScalarGridSpec(
            num_scalar_prefetch=0,
            grid=(Gp // B,),
            in_specs=[
                pl.BlockSpec((B * N, F), lambda g: (g, 0)),
                pl.BlockSpec((F, Hp), lambda g: (0, 0)),
                pl.BlockSpec((1, Hp), lambda g: (0, 0)),
                pl.BlockSpec((Hp, Zp), lambda g: (0, 0)),
                pl.BlockSpec((1, Zp), lambda g: (0, 0)),
            ],
            out_specs=pl.BlockSpec((B, Zp), lambda g: (g, 0)),
        ),
        compiler_params=pltpu.CompilerParams(
            dimension_semantics=("parallel",)),
    )(xp, params["w1"], params["b1"], params["wfc_t"], params["bfc"])
    return out[:G, :Z]


def reference_forward(x, w1, b1, wfc, bfc):
    zn = jnp.maximum(jnp.einsum("gnf,fh->gnh", x, w1) + b1, 0.0)
    zg = jnp.sum(zn, axis=1)                 # sum pooling
    return zg @ wfc.T + bfc                  # nn.Linear semantics


if __name__ == "__main__":
    # Small shapes: 32 graphs x 8 nodes x 16 features; z_g_dim = 32 (graph
    # embedding / fc input), z_n_dim = 32 (fc output).  graphs_per_step=16
    # gives B*N = 128 rows per MXU push and 2 grid steps (both v7x TCs busy;
    # raise to 32-64 on v6e/v7x once G is large enough to keep >=2 steps/TC).
    G, N, F = 32, 8, 16
    Z_G_DIM, Z_N_DIM = 32, 32

    key = jax.random.PRNGKey(0)
    kx, kw1, kb1, kwf, kbf = jax.random.split(key, 5)

    x = jax.random.normal(kx, (G, N, F), dtype=jnp.float32)

    # Deterministic synthetic parameters (encoder dense layer + fc).
    w1 = jax.random.normal(kw1, (F, Z_G_DIM), dtype=jnp.float32) * 0.1
    b1 = jax.random.normal(kb1, (Z_G_DIM,), dtype=jnp.float32) * 0.1
    # fc: nn.Linear(z_g_dim, z_n_dim) -> weight shape (z_n_dim, z_g_dim)
    wfc = jax.random.normal(kwf, (Z_N_DIM, Z_G_DIM), dtype=jnp.float32) * 0.1
    bfc = jax.random.normal(kbf, (Z_N_DIM,), dtype=jnp.float32) * 0.1

    # TODO(synk): the original encoder is an arbitrary injected GNN; a fixed
    # dense+ReLU+sum-pool stand-in is used here since no encoder is specified.

    params = prepare_infog_params(w1, b1, wfc, bfc)   # one-time pad/cast
    out = infog_enc_forward(x, params, graphs_per_step=16)
    jax.block_until_ready(out)

    ref = reference_forward(x, w1, b1, wfc, bfc)
    assert out.shape == (G, Z_N_DIM)
    # bf16 operands (f32 accumulation) vs f32 reference: loose-ish tolerance.
    assert jnp.allclose(out, ref, atol=2e-2, rtol=2e-2), "mismatch vs reference"

    print("KERNEL_OK")
</pallas_src>

<mosaic_0001>
module attributes {stable_mosaic.version = 11 : i64} {
  func.func @infog_enc_kernel(%arg0: i32, %arg1: memref<128x16xbf16, #tpu.memory_space<vmem>>, %arg2: memref<16x128xbf16, #tpu.memory_space<vmem>>, %arg3: memref<1x128xf32, #tpu.memory_space<vmem>>, %arg4: memref<128x128xbf16, #tpu.memory_space<vmem>>, %arg5: memref<1x128xf32, #tpu.memory_space<vmem>>, %arg6: memref<16x128xf32, #tpu.memory_space<vmem>>) attributes {dimension_semantics = [#tpu.dimension_semantics<parallel>], iteration_bounds = array<i64: 2>, scalar_prefetch = 0 : i64, scratch_operands = 0 : i64, tpu.core_type = #tpu.core_type<tc>, window_params = [{transform_indices = @transform_0, window_bounds = array<i64: 128, 16>}, {pipeline_mode = #tpu.pipeline_mode<synchronous>, transform_indices = @transform_1, window_bounds = array<i64: 16, 128>}, {pipeline_mode = #tpu.pipeline_mode<synchronous>, transform_indices = @transform_2, window_bounds = array<i64: 1, 128>}, {pipeline_mode = #tpu.pipeline_mode<synchronous>, transform_indices = @transform_3, window_bounds = array<i64: 128, 128>}, {pipeline_mode = #tpu.pipeline_mode<synchronous>, transform_indices = @transform_4, window_bounds = array<i64: 1, 128>}, {transform_indices = @transform_5, window_bounds = array<i64: 16, 128>}]} {
    %c0 = arith.constant 0 : index
    %c0_0 = arith.constant 0 : index
    %0 = vector.load %arg1[%c0, %c0_0] : memref<128x16xbf16, #tpu.memory_space<vmem>>, vector<128x16xbf16>
    %c0_1 = arith.constant 0 : index
    %c0_2 = arith.constant 0 : index
    %1 = vector.load %arg2[%c0_1, %c0_2] : memref<16x128xbf16, #tpu.memory_space<vmem>>, vector<16x128xbf16>
    %cst = arith.constant dense<0.000000e+00> : vector<128x128xf32>
    %2 = tpu.matmul %0, %1, %cst {dimension_numbers = #tpu.dot_dimension_numbers<[1], [0], [0], [1], [0, 0, 1, 1], [], []>} : vector<128x16xbf16>, vector<16x128xbf16>, vector<128x128xf32> -> vector<128x128xf32>
    %c0_3 = arith.constant 0 : index
    %c0_4 = arith.constant 0 : index
    %3 = vector.load %arg3[%c0_3, %c0_4] : memref<1x128xf32, #tpu.memory_space<vmem>>, vector<1x128xf32>
    %4 = vector.broadcast %3 : vector<1x128xf32> to vector<128x128xf32>
    %5 = arith.addf %2, %4 : vector<128x128xf32>
    %cst_5 = arith.constant 0.000000e+00 : f32
    %6 = vector.broadcast %cst_5 : f32 to vector<128x128xf32>
    %7 = arith.maximumf %5, %6 : vector<128x128xf32>
    %8 = vector.shape_cast %7 : vector<128x128xf32> to vector<16x8x128xf32>
    %cst_6 = arith.constant dense<0.000000e+00> : vector<16x128xf32>
    %9 = vector.multi_reduction <add>, %8, %cst_6 [1] : vector<16x8x128xf32> to vector<16x128xf32>
    %10 = arith.truncf %9 : vector<16x128xf32> to vector<16x128xbf16>
    %c0_7 = arith.constant 0 : index
    %c0_8 = arith.constant 0 : index
    %11 = vector.load %arg4[%c0_7, %c0_8] : memref<128x128xbf16, #tpu.memory_space<vmem>>, vector<128x128xbf16>
    %cst_9 = arith.constant dense<0.000000e+00> : vector<16x128xf32>
    %12 = tpu.matmul %10, %11, %cst_9 {dimension_numbers = #tpu.dot_dimension_numbers<[1], [0], [0], [1], [0, 0, 1, 1], [], []>} : vector<16x128xbf16>, vector<128x128xbf16>, vector<16x128xf32> -> vector<16x128xf32>
    %c0_10 = arith.constant 0 : index
    %c0_11 = arith.constant 0 : index
    %13 = vector.load %arg5[%c0_10, %c0_11] : memref<1x128xf32, #tpu.memory_space<vmem>>, vector<1x128xf32>
    %14 = vector.broadcast %13 : vector<1x128xf32> to vector<16x128xf32>
    %15 = arith.addf %12, %14 : vector<16x128xf32>
    %c0_12 = arith.constant 0 : index
    %c0_13 = arith.constant 0 : index
    %16 = vector.load %arg6[%c0_12, %c0_13] : memref<16x128xf32, #tpu.memory_space<vmem>>, vector<16x128xf32>
    tpu.vector_store %arg6[%c0_12, %c0_13], %15 {strides = array<i32>} : memref<16x128xf32, #tpu.memory_space<vmem>>, vector<16x128xf32>,
    return
  }
  func.func @transform_0(%arg0: i32) -> (i32, i32) {
    %c0_i32 = arith.constant 0 : i32
    %c0_i32_0 = arith.constant 0 : i32
    return %arg0, %c0_i32 : i32, i32
  }
  func.func @transform_1(%arg0: i32) -> (i32, i32) {
    %c0_i32 = arith.constant 0 : i32
    %c0_i32_0 = arith.constant 0 : i32
    %c0_i32_1 = arith.constant 0 : i32
    return %c0_i32, %c0_i32_0 : i32, i32
  }
  func.func @transform_2(%arg0: i32) -> (i32, i32) {
    %c0_i32 = arith.constant 0 : i32
    %c0_i32_0 = arith.constant 0 : i32
    %c0_i32_1 = arith.constant 0 : i32
    return %c0_i32, %c0_i32_0 : i32, i32
  }
  func.func @transform_3(%arg0: i32) -> (i32, i32) {
    %c0_i32 = arith.constant 0 : i32
    %c0_i32_0 = arith.constant 0 : i32
    %c0_i32_1 = arith.constant 0 : i32
    return %c0_i32, %c0_i32_0 : i32, i32
  }
  func.func @transform_4(%arg0: i32) -> (i32, i32) {
    %c0_i32 = arith.constant 0 : i32
    %c0_i32_0 = arith.constant 0 : i32
    %c0_i32_1 = arith.constant 0 : i32
    return %c0_i32, %c0_i32_0 : i32, i32
  }
  func.func @transform_5(%arg0: i32) -> (i32, i32) {
    %c0_i32 = arith.constant 0 : i32
    %c0_i32_0 = arith.constant 0 : i32
    return %arg0, %c0_i32 : i32, i32
  }
}

</mosaic_0001>

<llo_original>
// kernel: tpu_custom_call.1
$region0: #{tpu_custom_call.1}
  #allocation0 [shape = 'u32[]', space=smem, size = 0x4, offset = 0x4, fixed_abs, tag = 'smem constant byte address 0x4 - core index']
  #allocation1 [shape = 'u32[72,128]{1,0:T(1,128)}', space=vmem, size = 0x9000, scoped, tag = 'internal scratch']
  %s0 = inlined_call_operand.vmem [shape: bf16[256,16], index: 0, kind: input, shape index: {}]
  %s1 = inlined_call_operand.vmem [shape: bf16[16,128], index: 1, kind: input, shape index: {}]
  %s2 = inlined_call_operand.vmem [shape: f32[1,128], index: 2, kind: input, shape index: {}]
  %s3 = inlined_call_operand.vmem [shape: bf16[128,128], index: 3, kind: input, shape index: {}]
  %s4 = inlined_call_operand.vmem [shape: f32[1,128], index: 4, kind: input, shape index: {}]
  %s5 = inlined_call_operand.hbm [shape: f32[32,128], index: 5, kind: output, shape index: {}]
  %s6 = sld [smem:[#allocation0]]
  $region53: #{tpu_custom_call.1} parent=0
    _
  %s8 = ssub.s32 1, %s6
  %s9 = scalar_select 0, %s8, %s6
  $region1: #{tpu_custom_call.1} parent=0
    #allocation2 [shape = 'u8[16384]{0}', space=vmem, size = 0x4000, scoped, tag = 'output window, operand 0']
    #allocation3 [shape = 's32[2]{0}', space=sflag, size = 0x8, scoped, tag = 'scoped memory for tpu_custom_call.1']
    %10 = vsyncpa [#allocation3], 0
    %s11 = scalar_lea.sflag [#allocation3], 1
    %12 = vsyncpa %s11, 0
    loop: start=0, step=1, limit=4
    $region2: #{tpu_custom_call.1} parent=1 // loop_pre_header
      _
    $region3: #{tpu_custom_call.1} parent=1 // loop_header
      %s14 = sphi 0, %s18
      %p15 = scmp.ge.s32.totalorder %s14, 4
      %s24 = sphi 0, %s26
      %s27 = sphi 0, %s24
      %s28 = sphi 0, %s27
      %s44 = sphi 0, %s28
      %s48 = sphi 0, %s48
      %s50 = sphi 0, %s48
      %s51 = sphi 0, %s50
      %s65 = sphi 0, %s51
      %s69 = sphi 0, %s69
      %s71 = sphi 0, %s69
      %s72 = sphi 0, %s71
      %s86 = sphi 0, %s72
      %s90 = sphi 0, %s90
      %s92 = sphi 0, %s90
      %s93 = sphi 0, %s92
      %s107 = sphi 0, %s93
      %s111 = sphi 0, %s111
      %s113 = sphi 0, %s111
      %s114 = sphi 0, %s113
      %s128 = sphi 0, %s114
      %s134 = sphi 0, %s136
      %s137 = sphi 0, %s134
      %s138 = sphi 0, %s137
      %s154 = sphi 0, %s138
    $region4: #{tpu_custom_call.1} parent=1 // loop_header_branch
      %17 = sbr.rel (%p15) target = $region8
    $region5: #{tpu_custom_call.1} parent=1 // loop_body
      %s19 = ssub.s32 %s14, 1
      %s20 = ssub.s32 %s14, 2
      %s21 = sadd.s32 %s14, 1
      %s22 = ssub.s32 %s14, %s21
      %p23 = scmp.eq.s32.totalorder %s22, 0
      %s25 = sadd.s32 %s24, 1
      %s26 = scalar_select %p23, %s24, %s25
      %p29 = pneg %p23
      %p30 = scmp.eq.s32.totalorder %s14, 1
      %p31 = por %p29, %p30
      %p32 = scmp.ne.s32.totalorder %s24, %s27
      %p33 = scmp.eq.s32.totalorder %s14, 0
      %p34 = por %p32, %p33
      %p35 = scmp.ne.s32.totalorder %s24, %s27
      %p36 = scmp.eq.s32.totalorder %s19, 1
      %p37 = por %p35, %p36
      %p38 = scmp.ne.s32.totalorder %s27, %s28
      %p39 = scmp.eq.s32.totalorder %s19, 0
      %p40 = por %p38, %p39
      %p41 = scmp.ne.s32.totalorder %s27, %s28
      %p42 = scmp.eq.s32.totalorder %s20, 1
      %p43 = por %p41, %p42
      %p45 = scmp.ne.s32.totalorder %s28, %s44
      %p46 = scmp.eq.s32.totalorder %s20, 0
      %p47 = por %p45, %p46
      %s49 = sadd.s32 %s48, 1
      %p52 = scmp.eq.s32.totalorder %s14, 1
      %p53 = scmp.ne.s32.totalorder %s48, %s50
      %p54 = scmp.eq.s32.totalorder %s14, 0
      %p55 = por %p53, %p54
      %p56 = scmp.ne.s32.totalorder %s48, %s50
      %p57 = scmp.eq.s32.totalorder %s19, 1
      %p58 = por %p56, %p57
      %p59 = scmp.ne.s32.totalorder %s50, %s51
      %p60 = scmp.eq.s32.totalorder %s19, 0
      %p61 = por %p59, %p60
      %p62 = scmp.ne.s32.totalorder %s50, %s51
      %p63 = scmp.eq.s32.totalorder %s20, 1
      %p64 = por %p62, %p63
      %p66 = scmp.ne.s32.totalorder %s51, %s65
      %p67 = scmp.eq.s32.totalorder %s20, 0
      %p68 = por %p66, %p67
      %s70 = sadd.s32 %s69, 1
      %p73 = scmp.eq.s32.totalorder %s14, 1
      %p74 = scmp.ne.s32.totalorder %s69, %s71
      %p75 = scmp.eq.s32.totalorder %s14, 0
      %p76 = por %p74, %p75
      %p77 = scmp.ne.s32.totalorder %s69, %s71
      %p78 = scmp.eq.s32.totalorder %s19, 1
      %p79 = por %p77, %p78
      %p80 = scmp.ne.s32.totalorder %s71, %s72
      %p81 = scmp.eq.s32.totalorder %s19, 0
      %p82 = por %p80, %p81
      %p83 = scmp.ne.s32.totalorder %s71, %s72
      %p84 = scmp.eq.s32.totalorder %s20, 1
      %p85 = por %p83, %p84
      %p87 = scmp.ne.s32.totalorder %s72, %s86
      %p88 = scmp.eq.s32.totalorder %s20, 0
      %p89 = por %p87, %p88
      %s91 = sadd.s32 %s90, 1
      %p94 = scmp.eq.s32.totalorder %s14, 1
      %p95 = scmp.ne.s32.totalorder %s90, %s92
      %p96 = scmp.eq.s32.totalorder %s14, 0
      %p97 = por %p95, %p96
      %p98 = scmp.ne.s32.totalorder %s90, %s92
      %p99 = scmp.eq.s32.totalorder %s19, 1
      %p100 = por %p98, %p99
      %p101 = scmp.ne.s32.totalorder %s92, %s93
      %p102 = scmp.eq.s32.totalorder %s19, 0
      %p103 = por %p101, %p102
      %p104 = scmp.ne.s32.totalorder %s92, %s93
      %p105 = scmp.eq.s32.totalorder %s20, 1
      %p106 = por %p104, %p105
      %p108 = scmp.ne.s32.totalorder %s93, %s107
      %p109 = scmp.eq.s32.totalorder %s20, 0
      %p110 = por %p108, %p109
      %s112 = sadd.s32 %s111, 1
      %p115 = scmp.eq.s32.totalorder %s14, 1
      %p116 = scmp.ne.s32.totalorder %s111, %s113
      %p117 = scmp.eq.s32.totalorder %s14, 0
      %p118 = por %p116, %p117
      %p119 = scmp.ne.s32.totalorder %s111, %s113
      %p120 = scmp.eq.s32.totalorder %s19, 1
      %p121 = por %p119, %p120
      %p122 = scmp.ne.s32.totalorder %s113, %s114
      %p123 = scmp.eq.s32.totalorder %s19, 0
      %p124 = por %p122, %p123
      %p125 = scmp.ne.s32.totalorder %s113, %s114
      %p126 = scmp.eq.s32.totalorder %s20, 1
      %p127 = por %p125, %p126
      %p129 = scmp.ne.s32.totalorder %s114, %s128
      %p130 = scmp.eq.s32.totalorder %s20, 0
      %p131 = por %p129, %p130
      %s132 = ssub.s32 %s14, %s21
      %p133 = scmp.eq.s32.totalorder %s132, 0
      %s135 = sadd.s32 %s134, 1
      %s136 = scalar_select %p133, %s134, %s135
      %p139 = pneg %p133
      %p140 = scmp.eq.s32.totalorder %s14, 1
      %p141 = por %p139, %p140
      %p142 = scmp.ne.s32.totalorder %s134, %s137
      %p143 = scmp.eq.s32.totalorder %s14, 0
      %p144 = por %p142, %p143
      %p145 = scmp.ne.s32.totalorder %s134, %s137
      %p146 = scmp.eq.s32.totalorder %s19, 1
      %p147 = por %p145, %p146
      %p148 = scmp.ne.s32.totalorder %s137, %s138
      %p149 = scmp.eq.s32.totalorder %s19, 0
      %p150 = por %p148, %p149
      %p151 = scmp.ne.s32.totalorder %s137, %s138
      %p152 = scmp.eq.s32.totalorder %s20, 1
      %p153 = por %p151, %p152
      %p155 = scmp.ne.s32.totalorder %s138, %s154
      %p156 = scmp.eq.s32.totalorder %s20, 0
      %p157 = por %p155, %p156
      %p158 = scmp.le.s32.totalorder 1, %s14
      %p159 = scmp.lt.s32.totalorder %s14, 3
      %p160 = pnand %p158, %p159
      %p161 = pneg %p160
      // Predicated region
      $region9: #{tpu_custom_call.1} parent=5 // pred_check
        _
      $region10: #{tpu_custom_call.1} parent=5 // pred_check_branch
        %163 = sbr.rel (%p160) target = $region12
      $region11: #{tpu_custom_call.1} parent=5 // pred_region
        %s164 = ssub.s32 %s14, 1
        // Predicated region
        $region13: #{tpu_custom_call.1} parent=11 // pred_check
          %p165 = pneg %p61
        $region14: #{tpu_custom_call.1} parent=11 // pred_check_branch
          %167 = sbr.rel (%p165) target = $region16
        $region15: #{tpu_custom_call.1} parent=11 // pred_region
          _
        $region16: #{tpu_custom_call.1} parent=11 // pred_fallthru
          _
        // Predicated region
        $region17: #{tpu_custom_call.1} parent=11 // pred_check
          %p168 = pneg %p82
        $region18: #{tpu_custom_call.1} parent=11 // pred_check_branch
          %170 = sbr.rel (%p168) target = $region20
        $region19: #{tpu_custom_call.1} parent=11 // pred_region
          _
        $region20: #{tpu_custom_call.1} parent=11 // pred_fallthru
          _
        // Predicated region
        $region21: #{tpu_custom_call.1} parent=11 // pred_check
          %p171 = pneg %p103
        $region22: #{tpu_custom_call.1} parent=11 // pred_check_branch
          %173 = sbr.rel (%p171) target = $region24
        $region23: #{tpu_custom_call.1} parent=11 // pred_region
          _
        $region24: #{tpu_custom_call.1} parent=11 // pred_fallthru
          _
        // Predicated region
        $region25: #{tpu_custom_call.1} parent=11 // pred_check
          %p174 = pneg %p124
        $region26: #{tpu_custom_call.1} parent=11 // pred_check_branch
          %176 = sbr.rel (%p174) target = $region28
        $region27: #{tpu_custom_call.1} parent=11 // pred_region
          _
        $region28: #{tpu_custom_call.1} parent=11 // pred_fallthru
          _
      $region12: #{tpu_custom_call.1} parent=5 // pred_fallthru
        _
      %p177 = scmp.lt.s32.totalorder %s14, 2
      // Predicated region
      $region29: #{tpu_custom_call.1} parent=5 // pred_check
        %p178 = pneg %p177
      $region30: #{tpu_custom_call.1} parent=5 // pred_check_branch
        %180 = sbr.rel (%p178) target = $region32
      $region31: #{tpu_custom_call.1} parent=5 // pred_region
        // Predicated region
        $region33: #{tpu_custom_call.1} parent=31 // pred_check
          %p181 = pneg %p34
        $region34: #{tpu_custom_call.1} parent=31 // pred_check_branch
          %183 = sbr.rel (%p181) target = $region36
        $region35: #{tpu_custom_call.1} parent=31 // pred_region
          %s184 = smul.u32 16, %s14
          %p185 = scmp.lt.s32.totalorder %s184, 31
          %s186 = scalar_select %p185, %s184, 31
          %s187 = smul.addr %s186, 4
          %s188 = scalar_lea.vmem %s0, %s187
          %s189 = smul.u32 16, %s14
        $region36: #{tpu_custom_call.1} parent=31 // pred_fallthru
          _
      $region32: #{tpu_custom_call.1} parent=5 // pred_fallthru
        _
      %p190 = scmp.le.s32.totalorder 1, %s14
      %p191 = scmp.lt.s32.totalorder %s14, 3
      %p192 = pnand %p190, %p191
      %p193 = pneg %p192
      // Predicated region
      $region37: #{tpu_custom_call.1} parent=5 // pred_check
        _
      $region38: #{tpu_custom_call.1} parent=5 // pred_check_branch
        %195 = sbr.rel (%p192) target = $region40
      $region39: #{tpu_custom_call.1} parent=5 // pred_region
        %s196 = ssub.s32 %s14, 1
        %s197 = smul.u32 16, %s19
        %p198 = scmp.lt.s32.totalorder %s197, 31
        %s199 = scalar_select %p198, %s197, 31
        %s200 = smul.addr %s199, 4
        %s201 = scalar_lea.vmem %s0, %s200
        %p202 = pneg %p40
        %p203 = pneg %p37
        %p204 = pneg %p61
        %p205 = pneg %p58
        %p206 = pneg %p82
        %p207 = pneg %p79
        %p208 = pneg %p103
        %p209 = pneg %p100
        %p210 = pneg %p124
        %p211 = pneg %p121
        %p212 = pneg %p150
        %p213 = pneg %p147
        %s214 = sand.u32 %s137, 1
        %s215 = scalar_lea.sflag [#allocation3], %s214
        %s216 = sand.u32 %s137, 1
        %s217 = smul.addr %s216, 16
        %s218 = scalar_lea.vmem [#allocation2], %s217
        %s219 = smul.u32 16, %s19
        %p220 = scmp.lt.s32.totalorder %s219, 31
        %s221 = scalar_select %p220, %s219, 31
        %s222 = smul.addr %s221, 4
        %s223 = scalar_lea.vmem %s0, %s222
        %s224 = smul.u32 16, %s19
        %s225 = smul.u32 2, %s19
        %v227 = vld [vmem:[%s223] sm:$0xf]
        %v228 = vld [vmem:[%s223 + $0x4] sm:$0xf]
        %v229 = vld [vmem:[%s223 + $0x8] sm:$0xf]
        %v230 = vld [vmem:[%s223 + $0xc] sm:$0xf]
        %v231 = vld [vmem:[%s223 + $0x10] sm:$0xf]
        %v232 = vld [vmem:[%s223 + $0x14] sm:$0xf]
        %v233 = vld [vmem:[%s223 + $0x18] sm:$0xf]
        %v234 = vld [vmem:[%s223 + $0x1c] sm:$0xf]
        %v235 = vld [vmem:[%s223 + $0x20] sm:$0xf]
        %v236 = vld [vmem:[%s223 + $0x24] sm:$0xf]
        %v237 = vld [vmem:[%s223 + $0x28] sm:$0xf]
        %v238 = vld [vmem:[%s223 + $0x2c] sm:$0xf]
        %v239 = vld [vmem:[%s223 + $0x30] sm:$0xf]
        %v240 = vld [vmem:[%s223 + $0x34] sm:$0xf]
        %v241 = vld [vmem:[%s223 + $0x38] sm:$0xf]
        %v242 = vld [vmem:[%s223 + $0x3c] sm:$0xf]
        %v243 = vld [vmem:[%s1] sm:$0xf]
        %v244 = vld [vmem:[%s1 + $0x4] sm:$0xf]
        %v245 = vld [vmem:[%s2] sm:$0x1]
        %v247 = vperm.slane %v245, 0
        %v265 = vunpack.c.l.b16 %v227
        %v266 = vunpack.c.l.b16 %v228
        %v267 = vunpack.c.l.b16 %v229
        %v268 = vunpack.c.l.b16 %v230
        %v269 = vunpack.c.l.b16 %v231
        %v270 = vunpack.c.l.b16 %v232
        %v271 = vunpack.c.l.b16 %v233
        %v272 = vunpack.c.l.b16 %v234
        %v273 = vunpack.c.l.b16 %v235
        %v274 = vunpack.c.l.b16 %v236
        %v275 = vunpack.c.l.b16 %v237
        %v276 = vunpack.c.l.b16 %v238
        %v277 = vunpack.c.l.b16 %v239
        %v278 = vunpack.c.l.b16 %v240
        %v279 = vunpack.c.l.b16 %v241
        %v280 = vunpack.c.l.b16 %v242
        %v281 = vpack.c.b16 %v266, %v265
        %v282 = vpack.c.b16 %v268, %v267
        %v283 = vpack.c.b16 %v270, %v269
        %v284 = vpack.c.b16 %v272, %v271
        %v285 = vpack.c.b16 %v274, %v273
        %v286 = vpack.c.b16 %v276, %v275
        %v287 = vpack.c.b16 %v278, %v277
        %v288 = vpack.c.b16 %v280, %v279
        %v291 = vunpack.c.l.b16 %v243
        %v292 = vunpack.c.l.b16 %v244
        %v293 = vpack.c.b16 %v292, %v291
        %vm295 = vcmask 130048
        %v297 = vsel %vm295, %v281, 0
        %v300 = vsel %vm295, %v282, 0
        %v303 = vsel %vm295, %v283, 0
        %v306 = vsel %vm295, %v284, 0
        %v309 = vsel %vm295, %v285, 0
        %v312 = vsel %vm295, %v286, 0
        %v315 = vsel %vm295, %v287, 0
        %v318 = vsel %vm295, %v288, 0
        %320 = vmatpush.bf16.msra.mxu0 0
        %321 = vmatpush.bf16.msra.mxu0 0
        %322 = vmatpush.bf16.msra.mxu0 0
        %323 = vmatpush.bf16.msra.mxu0 0
        %324 = vmatpush.bf16.msra.mxu0 0
        %325 = vmatpush.bf16.msra.mxu0 0
        %326 = vmatpush.bf16.msra.mxu0 0
        %327 = vmatpush.bf16.msra.mxu0 %v293
        %328 = vmatmul.bf16.gmra.mxu0 %v297
        %v329 = vpop.f32.mrf.mxu0
        %v330 = vadd.f32 %v247, %v329
        %v331 = vpop.f32.mrf.mxu0
        %v332 = vadd.f32 %v247, %v331
        %333 = vmatmul.bf16.gmra.mxu0 %v300
        %v334 = vpop.f32.mrf.mxu0
        %v335 = vadd.f32 %v247, %v334
        %v336 = vpop.f32.mrf.mxu0
        %v337 = vadd.f32 %v247, %v336
        %338 = vmatmul.bf16.gmra.mxu0 %v303
        %v339 = vpop.f32.mrf.mxu0
        %v340 = vadd.f32 %v247, %v339
        %v341 = vpop.f32.mrf.mxu0
        %v342 = vadd.f32 %v247, %v341
        %343 = vmatmul.bf16.gmra.mxu0 %v306
        %v344 = vpop.f32.mrf.mxu0
        %v345 = vadd.f32 %v247, %v344
        %v346 = vpop.f32.mrf.mxu0
        %v347 = vadd.f32 %v247, %v346
        %348 = vmatmul.bf16.gmra.mxu0 %v309
        %v349 = vpop.f32.mrf.mxu0
        %v350 = vadd.f32 %v247, %v349
        %v351 = vpop.f32.mrf.mxu0
        %v352 = vadd.f32 %v247, %v351
        %353 = vmatmul.bf16.gmra.mxu0 %v312
        %v354 = vpop.f32.mrf.mxu0
        %v355 = vadd.f32 %v247, %v354
        %v356 = vpop.f32.mrf.mxu0
        %v357 = vadd.f32 %v247, %v356
        %358 = vmatmul.bf16.gmra.mxu0 %v315
        %v359 = vpop.f32.mrf.mxu0
        %v360 = vadd.f32 %v247, %v359
        %v361 = vpop.f32.mrf.mxu0
        %v362 = vadd.f32 %v247, %v361
        %363 = vmatmul.bf16.gmra.mxu0 %v318
        %v364 = vpop.f32.mrf.mxu0
        %v365 = vadd.f32 %v247, %v364
        %v366 = vpop.f32.mrf.mxu0
        %v367 = vadd.f32 %v247, %v366
        %368 = vdwg.mxu0
        %v369 = vmax.f32 %v330, 0.0
        %v370 = vmax.f32 %v332, 0.0
        %v371 = vmax.f32 %v335, 0.0
        %v372 = vmax.f32 %v337, 0.0
        %v373 = vmax.f32 %v340, 0.0
        %v374 = vmax.f32 %v342, 0.0
        %v375 = vmax.f32 %v345, 0.0
        %v376 = vmax.f32 %v347, 0.0
        %v377 = vmax.f32 %v350, 0.0
        %v378 = vmax.f32 %v352, 0.0
        %v379 = vmax.f32 %v355, 0.0
        %v380 = vmax.f32 %v357, 0.0
        %v381 = vmax.f32 %v360, 0.0
        %v382 = vmax.f32 %v362, 0.0
        %v383 = vmax.f32 %v365, 0.0
        %v384 = vmax.f32 %v367, 0.0
        %v385 = vrot.slane %v369, 4
        %v386 = vadd.f32 %v369, %v385
        %v387 = vrot.slane %v386, 2
        %v388 = vadd.f32 %v386, %v387
        %v389 = vrot.slane %v388, 1
        %v390 = vadd.f32 %v388, %v389
        %v391 = vrot.slane %v370, 4
        %v392 = vadd.f32 %v370, %v391
        %v393 = vrot.slane %v392, 2
        %v394 = vadd.f32 %v392, %v393
        %v395 = vrot.slane %v394, 1
        %v396 = vadd.f32 %v394, %v395
        %v397 = vrot.slane %v371, 4
        %v398 = vadd.f32 %v371, %v397
        %v399 = vrot.slane %v398, 2
        %v400 = vadd.f32 %v398, %v399
        %v401 = vrot.slane %v400, 1
        %v402 = vadd.f32 %v400, %v401
        %v403 = vrot.slane %v372, 4
        %v404 = vadd.f32 %v372, %v403
        %v405 = vrot.slane %v404, 2
        %v406 = vadd.f32 %v404, %v405
        %v407 = vrot.slane %v406, 1
        %v408 = vadd.f32 %v406, %v407
        %v409 = vrot.slane %v373, 4
        %v410 = vadd.f32 %v373, %v409
        %v411 = vrot.slane %v410, 2
        %v412 = vadd.f32 %v410, %v411
        %v413 = vrot.slane %v412, 1
        %v414 = vadd.f32 %v412, %v413
        %v415 = vrot.slane %v374, 4
        %v416 = vadd.f32 %v374, %v415
        %v417 = vrot.slane %v416, 2
        %v418 = vadd.f32 %v416, %v417
        %v419 = vrot.slane %v418, 1
        %v420 = vadd.f32 %v418, %v419
        %v421 = vrot.slane %v375, 4
        %v422 = vadd.f32 %v375, %v421
        %v423 = vrot.slane %v422, 2
        %v424 = vadd.f32 %v422, %v423
        %v425 = vrot.slane %v424, 1
        %v426 = vadd.f32 %v424, %v425
        %v427 = vrot.slane %v376, 4
        %v428 = vadd.f32 %v376, %v427
        %v429 = vrot.slane %v428, 2
        %v430 = vadd.f32 %v428, %v429
        %v431 = vrot.slane %v430, 1
        %v432 = vadd.f32 %v430, %v431
        %v433 = vrot.slane %v377, 4
        %v434 = vadd.f32 %v377, %v433
        %v435 = vrot.slane %v434, 2
        %v436 = vadd.f32 %v434, %v435
        %v437 = vrot.slane %v436, 1
        %v438 = vadd.f32 %v436, %v437
        %v439 = vrot.slane %v378, 4
        %v440 = vadd.f32 %v378, %v439
        %v441 = vrot.slane %v440, 2
        %v442 = vadd.f32 %v440, %v441
        %v443 = vrot.slane %v442, 1
        %v444 = vadd.f32 %v442, %v443
        %v445 = vrot.slane %v379, 4
        %v446 = vadd.f32 %v379, %v445
        %v447 = vrot.slane %v446, 2
        %v448 = vadd.f32 %v446, %v447
        %v449 = vrot.slane %v448, 1
        %v450 = vadd.f32 %v448, %v449
        %v451 = vrot.slane %v380, 4
        %v452 = vadd.f32 %v380, %v451
        %v453 = vrot.slane %v452, 2
        %v454 = vadd.f32 %v452, %v453
        %v455 = vrot.slane %v454, 1
        %v456 = vadd.f32 %v454, %v455
        %v457 = vrot.slane %v381, 4
        %v458 = vadd.f32 %v381, %v457
        %v459 = vrot.slane %v458, 2
        %v460 = vadd.f32 %v458, %v459
        %v461 = vrot.slane %v460, 1
        %v462 = vadd.f32 %v460, %v461
        %v463 = vrot.slane %v382, 4
        %v464 = vadd.f32 %v382, %v463
        %v465 = vrot.slane %v464, 2
        %v466 = vadd.f32 %v464, %v465
        %v467 = vrot.slane %v466, 1
        %v468 = vadd.f32 %v466, %v467
        %v469 = vrot.slane %v383, 4
        %v470 = vadd.f32 %v383, %v469
        %v471 = vrot.slane %v470, 2
        %v472 = vadd.f32 %v470, %v471
        %v473 = vrot.slane %v472, 1
        %v474 = vadd.f32 %v472, %v473
        %v475 = vrot.slane %v384, 4
        %v476 = vadd.f32 %v384, %v475
        %v477 = vrot.slane %v476, 2
        %v478 = vadd.f32 %v476, %v477
        %v479 = vrot.slane %v478, 1
        %v480 = vadd.f32 %v478, %v479
        %v481 = vpack.c.bf16 %v390, %v390
        %v482 = vpack.c.bf16 %v396, %v396
        %v483 = vpack.c.bf16 %v402, %v402
        %v484 = vpack.c.bf16 %v408, %v408
        %v485 = vpack.c.bf16 %v414, %v414
        %v486 = vpack.c.bf16 %v420, %v420
        %v487 = vpack.c.bf16 %v426, %v426
        %v488 = vpack.c.bf16 %v432, %v432
        %v489 = vpack.c.bf16 %v438, %v438
        %v490 = vpack.c.bf16 %v444, %v444
        %v491 = vpack.c.bf16 %v450, %v450
        %v492 = vpack.c.bf16 %v456, %v456
        %v493 = vpack.c.bf16 %v462, %v462
        %v494 = vpack.c.bf16 %v468, %v468
        %v495 = vpack.c.bf16 %v474, %v474
        %v496 = vpack.c.bf16 %v480, %v480
        %v497 = vld [vmem:[%s3] sm:$0xf]
        %v498 = vld [vmem:[%s3 + $0x4] sm:$0xf]
        %v499 = vld [vmem:[%s3 + $0x8] sm:$0xf]
        %v500 = vld [vmem:[%s3 + $0xc] sm:$0xf]
        %v501 = vld [vmem:[%s3 + $0x10] sm:$0xf]
        %v502 = vld [vmem:[%s3 + $0x14] sm:$0xf]
        %v503 = vld [vmem:[%s3 + $0x18] sm:$0xf]
        %v504 = vld [vmem:[%s3 + $0x1c] sm:$0xf]
        %v505 = vld [vmem:[%s3 + $0x20] sm:$0xf]
        %v506 = vld [vmem:[%s3 + $0x24] sm:$0xf]
        %v507 = vld [vmem:[%s3 + $0x28] sm:$0xf]
        %v508 = vld [vmem:[%s3 + $0x2c] sm:$0xf]
        %v509 = vld [vmem:[%s3 + $0x30] sm:$0xf]
        %v510 = vld [vmem:[%s3 + $0x34] sm:$0xf]
        %v511 = vld [vmem:[%s3 + $0x38] sm:$0xf]
        %v512 = vld [vmem:[%s3 + $0x3c] sm:$0xf]
        %v513 = vld [vmem:[%s4] sm:$0x1]
        %v515 = vperm.slane %v513, 0
        %v533 = vunpack.c.l.b16 %v481
        %v534 = vunpack.c.l.b16 %v482
        %v535 = vunpack.c.l.b16 %v483
        %v536 = vunpack.c.l.b16 %v484
        %v537 = vunpack.c.l.b16 %v485
        %v538 = vunpack.c.l.b16 %v486
        %v539 = vunpack.c.l.b16 %v487
        %v540 = vunpack.c.l.b16 %v488
        %v541 = vunpack.c.l.b16 %v489
        %v542 = vunpack.c.l.b16 %v490
        %v543 = vunpack.c.l.b16 %v491
        %v544 = vunpack.c.l.b16 %v492
        %v545 = vunpack.c.l.b16 %v493
        %v546 = vunpack.c.l.b16 %v494
        %v547 = vunpack.c.l.b16 %v495
        %v548 = vunpack.c.l.b16 %v496
        %vm549 = vcmask 1041409
        %v550 = vsel %vm549, %v534, %v533
        %vm551 = vcmask 1042434
        %v552 = vsel %vm551, %v535, %v550
        %vm553 = vcmask 1043459
        %v554 = vsel %vm553, %v536, %v552
        %vm555 = vcmask 1044484
        %v556 = vsel %vm555, %v537, %v554
        %vm557 = vcmask 1045509
        %v558 = vsel %vm557, %v538, %v556
        %vm559 = vcmask 1046534
        %v560 = vsel %vm559, %v539, %v558
        %vm561 = vcmask 1047559
        %v562 = vsel %vm561, %v540, %v560
        %v563 = vsel %vm549, %v542, %v541
        %v564 = vsel %vm551, %v543, %v563
        %v565 = vsel %vm553, %v544, %v564
        %v566 = vsel %vm555, %v545, %v565
        %v567 = vsel %vm557, %v546, %v566
        %v568 = vsel %vm559, %v547, %v567
        %v569 = vsel %vm561, %v548, %v568
        %v570 = vpack.c.b16 %v569, %v562
        %v588 = vunpack.c.l.b16 %v497
        %v589 = vunpack.c.l.b16 %v498
        %v590 = vunpack.c.l.b16 %v499
        %v591 = vunpack.c.l.b16 %v500
        %v592 = vunpack.c.l.b16 %v501
        %v593 = vunpack.c.l.b16 %v502
        %v594 = vunpack.c.l.b16 %v503
        %v595 = vunpack.c.l.b16 %v504
        %v596 = vunpack.c.l.b16 %v505
        %v597 = vunpack.c.l.b16 %v506
        %v598 = vunpack.c.l.b16 %v507
        %v599 = vunpack.c.l.b16 %v508
        %v600 = vunpack.c.l.b16 %v509
        %v601 = vunpack.c.l.b16 %v510
        %v602 = vunpack.c.l.b16 %v511
        %v603 = vunpack.c.l.b16 %v512
        %v604 = vpack.c.b16 %v589, %v588
        %v605 = vpack.c.b16 %v591, %v590
        %v606 = vpack.c.b16 %v593, %v592
        %v607 = vpack.c.b16 %v595, %v594
        %v608 = vpack.c.b16 %v597, %v596
        %v609 = vpack.c.b16 %v599, %v598
        %v610 = vpack.c.b16 %v601, %v600
        %v611 = vpack.c.b16 %v603, %v602
        %620 = vmatpush.bf16.msra.mxu0 %v611
        %621 = vmatpush.bf16.msra.mxu0 %v610
        %622 = vmatpush.bf16.msra.mxu0 %v609
        %623 = vmatpush.bf16.msra.mxu0 %v608
        %624 = vmatpush.bf16.msra.mxu0 %v607
        %625 = vmatpush.bf16.msra.mxu0 %v606
        %626 = vmatpush.bf16.msra.mxu0 %v605
        %627 = vmatpush.bf16.msra.mxu0 %v604
        %628 = vmatmul.bf16.gmra.mxu0 %v570
        %v629 = vpop.f32.mrf.mxu0
        %v630 = vadd.f32 %v515, %v629
        %v631 = vpop.f32.mrf.mxu0
        %v632 = vadd.f32 %v515, %v631
        %633 = vdwg.mxu0
        %634 = vst [vmem:[%s218] sm:$0xff] %v630
        %635 = vst [vmem:[%s218 + $0x8] sm:$0xff] %v632
        %s636 = sand.u32 %s137, 1
        %s637 = scalar_lea.sflag [#allocation3], %s636
        %s638 = sand.u32 %s137, 1
        %s639 = smul.addr %s638, 16
        %s640 = scalar_lea.vmem [#allocation2], %s639
        // Predicated region
        $region41: #{tpu_custom_call.1} parent=39 // pred_check
          %p641 = pneg %p147
        $region42: #{tpu_custom_call.1} parent=39 // pred_check_branch
          %643 = sbr.rel (%p641) target = $region44
        $region43: #{tpu_custom_call.1} parent=39 // pred_region
          %s644 = smul.u32 2, %s19
          %646 = vsyncadd %s637, 0
          %s647 = smul.addr %s644, 8
          %s648 = scalar_lea.hbm %s5, %s647
          %s649 = sshll.u32 %s640, 4
          %s650 = int_to_ptr.vmem [resolvable:$true] %s649
          %s651 = sshll.u32 %s648, 4
          %s652 = int_to_ptr.hbm [resolvable:$true] %s651
          %657 = dma.vmem_to_hbm [thread:$0]  %s650, 256, %s652, %s637, 128, 128, 8
        $region44: #{tpu_custom_call.1} parent=39 // pred_fallthru
          _
      $region40: #{tpu_custom_call.1} parent=5 // pred_fallthru
        _
      %p658 = scmp.le.s32.totalorder 2, %s14
      // Predicated region
      $region45: #{tpu_custom_call.1} parent=5 // pred_check
        %p659 = pneg %p658
      $region46: #{tpu_custom_call.1} parent=5 // pred_check_branch
        %661 = sbr.rel (%p659) target = $region48
      $region47: #{tpu_custom_call.1} parent=5 // pred_region
        %s662 = ssub.s32 %s14, 2
        // Predicated region
        $region49: #{tpu_custom_call.1} parent=47 // pred_check
          %p663 = pneg %p153
        $region50: #{tpu_custom_call.1} parent=47 // pred_check_branch
          %665 = sbr.rel (%p663) target = $region52
        $region51: #{tpu_custom_call.1} parent=47 // pred_region
          %s666 = sand.u32 %s138, 1
          %s667 = scalar_lea.sflag [#allocation3], %s666
          %s668 = sand.u32 %s138, 1
          %s669 = smul.addr %s668, 16
          %s670 = scalar_lea.vmem [#allocation2], %s669
          %672 = dma.done %s667, 256
        $region52: #{tpu_custom_call.1} parent=47 // pred_fallthru
          _
      $region48: #{tpu_custom_call.1} parent=5 // pred_fallthru
        _
    $region6: #{tpu_custom_call.1} parent=1 // loop_footer
      %s18 = sadd.s32 1, %s14
    $region7: #{tpu_custom_call.1} parent=1 // loop_footer_branch
      %13 = sbr.rel target = $region3
    $region8: #{tpu_custom_call.1} parent=1 // loop_exit
      _
    %673 = vsyncpa [#allocation3], 1
    %s674 = scalar_lea.sflag [#allocation3], 1
    %675 = vsyncpa %s674, 1

</llo_original>
